<compile_context>
chip_gen: v6e
topology: v6e:2x2x1
jax: 0.10.0
libtpu: 0.0.40
codegen_flags: <defaults>
</compile_context>

<pallas_src>
import jax
import jax.numpy as jnp
from jax import lax
from jax.experimental import pallas as pl
from jax.experimental.pallas import tpu as pltpu


_TB_MAX = 2048  # bound static unrolling / per-step tile height


def _round_up(x: int, m: int) -> int:
    return -(-x // m) * m


def _vmem_budget():
    """Return (vmem_limit_bytes, input_tile_budget_bytes) sized to the chip."""
    try:
        cap = pltpu.get_tpu_info().vmem_capacity_bytes
    except Exception:
        cap = 64 * 1024 * 1024  # assume the smallest (v7x-like) if unknown
    limit = min(cap // 2, 64 * 1024 * 1024)  # 64 MiB on v5e/v6e, 32 MiB on v7x
    budget = (limit * 3) // 4                # headroom for outputs / scratch / internal
    return limit, budget


def _pick_tiles(B: int, N: int, itemsize_sum: int, budget: int):
    """Choose (tb, tn). tb is a multiple of 8; tn == N (full rows) when the
    double-buffered input tiles fit `budget`, else a 128-multiple divisor of N."""
    b8 = max(8, _round_up(B, 8))

    def fits(tb, tn):
        # 2 buffers (double buffering); itemsize_sum covers both input arrays.
        return 2 * tb * tn * itemsize_sum <= budget

    # --- preferred path: whole rows per grid step (no reduction axis) ---
    if fits(8, N):
        tb_cap = max(8, (budget // (2 * N * itemsize_sum)) // 8 * 8)
        # keep >= 2 (ideally 4) blocks on the parallel B axis for multi-TC chips
        if b8 >= 32:
            desired_blocks = 4
        elif b8 >= 16:
            desired_blocks = 2
        else:
            desired_blocks = 1
        tb_par = _round_up(-(-b8 // desired_blocks), 8)
        tb = max(8, min(tb_cap, tb_par, b8, _TB_MAX))
        return tb, N

    # --- fallback for very large N: tile the row (reduction grid axis) ---
    tn = None
    for cand in range((N // 128) * 128, 127, -128):
        if N % cand == 0 and fits(8, cand):
            tn = cand
            break
    if tn is None:
        # TODO(synk): enormous N with no 128-multiple divisor that fits VMEM;
        # fall back to full rows at minimum tb and rely on the compiler.
        return 8, N
    tb_cap = max(8, (budget // (2 * tn * itemsize_sum)) // 8 * 8)
    tb = max(8, min(tb_cap, b8, _TB_MAX))
    return tb, tn


def _chunk_partial(out_ref, tgt_ref, rs, n_full):
    """Accumulate full 128-lane slices of one 8-row chunk into (8,128) f32
    register accumulators (sum(t), sum(o), sum(o*t)).  No VMEM scratch RMW."""
    zeros = jnp.zeros((8, 128), jnp.float32)
    at, ao, aot = zeros, zeros, zeros
    if n_full == 0:
        return at, ao, aot

    if n_full <= 32:  # short, fixed trip count: full static unroll
        for j in range(n_full):
            sl = slice(j * 128, (j + 1) * 128)
            o = out_ref[rs, sl].astype(jnp.float32)
            t = tgt_ref[rs, sl].astype(jnp.float32)
            at, ao, aot = at + t, ao + o, aot + o * t
        return at, ao, aot

    def body(j, carry):
        at, ao, aot = carry
        sl = pl.ds(pl.multiple_of(j * 128, 128), 128)
        o = out_ref[rs, sl].astype(jnp.float32)
        t = tgt_ref[rs, sl].astype(jnp.float32)
        return at + t, ao + o, aot + o * t

    return lax.fori_loop(0, n_full, body, (at, ao, aot), unroll=8)


def fpfn(output: jax.Array, target: jax.Array) -> jax.Array:
    B, N = output.shape
    assert target.shape == (B, N)

    itemsize_sum = jnp.dtype(output.dtype).itemsize + jnp.dtype(target.dtype).itemsize
    vmem_limit, budget = _vmem_budget()
    tb, tn = _pick_tiles(B, N, itemsize_sum, budget)
    n_true = float(N)  # exact N for sum(1 - target) = N - sum(target)

    if tn == N:
        # ---------------- Path A: full rows per grid step ----------------
        n_full, rem = divmod(N, 128)

        def kernel(out_ref, tgt_ref, loss_ref):
            for r in range(tb // 8):
                rs = slice(r * 8, (r + 1) * 8)
                at, ao, aot = _chunk_partial(out_ref, tgt_ref, rs, n_full)
                sum_t = jnp.sum(at, -1, keepdims=True)
                sum_o = jnp.sum(ao, -1, keepdims=True)
                sum_ot = jnp.sum(aot, -1, keepdims=True)
                if rem:  # ragged lane tail (N not a multiple of 128)
                    o = out_ref[rs, n_full * 128:].astype(jnp.float32)
                    t = tgt_ref[rs, n_full * 128:].astype(jnp.float32)
                    sum_t = sum_t + jnp.sum(t, -1, keepdims=True)
                    sum_o = sum_o + jnp.sum(o, -1, keepdims=True)
                    sum_ot = sum_ot + jnp.sum(o * t, -1, keepdims=True)
                s1 = sum_t                  # sum(target)
                s2 = n_true - sum_t         # sum(1 - target)
                num_fp = sum_o - sum_ot     # sum(output * (1 - target))
                num_fn = sum_t - sum_ot     # sum((1 - output) * target)
                loss_ref[rs, :] = num_fp / s2 + num_fn / s1

        per_row = pl.pallas_call(
            kernel,
            out_shape=jax.ShapeDtypeStruct((B, 1), jnp.float32),
            grid_spec=pltpu.PrefetchScalarGridSpec(
                num_scalar_prefetch=0,
                grid=(pl.cdiv(B, tb),),
                in_specs=[
                    pl.BlockSpec((tb, N), lambda i: (i, 0)),
                    pl.BlockSpec((tb, N), lambda i: (i, 0)),
                ],
                out_specs=pl.BlockSpec((tb, 1), lambda i: (i, 0)),
            ),
            compiler_params=pltpu.CompilerParams(
                dimension_semantics=("parallel",),
                vmem_limit_bytes=vmem_limit,
            ),
        )(output, target)
    else:
        # -------- Path B (very large N): tiled rows + scratch accumulators --------
        n_slices = tn // 128

        def kernel(out_ref, tgt_ref, loss_ref, acc_t, acc_o, acc_ot):
            k = pl.program_id(1)

            @pl.when(k == 0)
            def _init():
                acc_t[...] = jnp.zeros_like(acc_t)
                acc_o[...] = jnp.zeros_like(acc_o)
                acc_ot[...] = jnp.zeros_like(acc_ot)

            for r in range(tb // 8):
                rs = slice(r * 8, (r + 1) * 8)
                at, ao, aot = _chunk_partial(out_ref, tgt_ref, rs, n_slices)
                # single scratch RMW per 8-row chunk per tile (not per slice)
                acc_t[rs, :] += at
                acc_o[rs, :] += ao
                acc_ot[rs, :] += aot

            @pl.when(k == pl.num_programs(1) - 1)
            def _finalize():
                sum_t = jnp.sum(acc_t[...], -1, keepdims=True)
                sum_o = jnp.sum(acc_o[...], -1, keepdims=True)
                sum_ot = jnp.sum(acc_ot[...], -1, keepdims=True)
                s2 = n_true - sum_t
                loss_ref[...] = (sum_o - sum_ot) / s2 + (sum_t - sum_ot) / sum_t

        per_row = pl.pallas_call(
            kernel,
            out_shape=jax.ShapeDtypeStruct((B, 1), jnp.float32),
            grid_spec=pltpu.PrefetchScalarGridSpec(
                num_scalar_prefetch=0,
                grid=(pl.cdiv(B, tb), N // tn),
                in_specs=[
                    pl.BlockSpec((tb, tn), lambda i, k: (i, k)),
                    pl.BlockSpec((tb, tn), lambda i, k: (i, k)),
                ],
                out_specs=pl.BlockSpec((tb, 1), lambda i, k: (i, 0)),
                scratch_shapes=[
                    pltpu.VMEM((tb, 128), jnp.float32),  # sum(target)
                    pltpu.VMEM((tb, 128), jnp.float32),  # sum(output)
                    pltpu.VMEM((tb, 128), jnp.float32),  # sum(output*target)
                ],
            ),
            compiler_params=pltpu.CompilerParams(
                dimension_semantics=("parallel", "arbitrary"),
                vmem_limit_bytes=vmem_limit,
            ),
        )(output, target)

    # Note: rows with all-zero / all-one target give inf/nan, matching the
    # PyTorch reference (no epsilon guard there either).
    return jnp.mean(per_row)


def fpfn_ref(output: jax.Array, target: jax.Array) -> jax.Array:
    sum1 = jnp.sum(target, -1)
    sum2 = jnp.sum(1.0 - target, -1)
    loss = (jnp.sum(output * (1.0 - target), -1) / sum2
            + jnp.sum((1.0 - output) * target, -1) / sum1)
    return jnp.mean(loss)


if __name__ == "__main__":
    key = jax.random.PRNGKey(0)

    # Main check: B=8, N=256 (single block, full-row path).
    k1, k2 = jax.random.split(key)
    B, N = 8, 256
    output = jax.nn.sigmoid(jax.random.normal(k1, (B, N), dtype=jnp.float32))
    target = (jax.random.uniform(k2, (B, N)) > 0.5).astype(jnp.float32)

    loss = jax.block_until_ready(fpfn(output, target))
    ref = fpfn_ref(output, target)
    assert jnp.allclose(loss, ref, rtol=1e-5, atol=1e-5), (loss, ref)

    # Robustness check: B not a multiple of 8 and N not a multiple of 128
    # (partial edge block on the parallel B axis + ragged lane tail).
    k3, k4 = jax.random.split(k2)
    B2, N2 = 13, 200
    output2 = jax.nn.sigmoid(jax.random.normal(k3, (B2, N2), dtype=jnp.float32))
    target2 = (jax.random.uniform(k4, (B2, N2)) > 0.5).astype(jnp.float32)

    loss2 = jax.block_until_ready(fpfn(output2, target2))
    ref2 = fpfn_ref(output2, target2)
    assert jnp.allclose(loss2, ref2, rtol=1e-5, atol=1e-5), (loss2, ref2)

    print("KERNEL_OK")
</pallas_src>

<mosaic_0001>
module attributes {stable_mosaic.version = 11 : i64} {
  func.func @kernel(%arg0: i32, %arg1: memref<8x256xf32, #tpu.memory_space<vmem>>, %arg2: memref<8x256xf32, #tpu.memory_space<vmem>>, %arg3: memref<8x1xf32, #tpu.memory_space<vmem>>) attributes {dimension_semantics = [#tpu.dimension_semantics<parallel>], iteration_bounds = array<i64: 1>, scalar_prefetch = 0 : i64, scratch_operands = 0 : i64, tpu.core_type = #tpu.core_type<tc>, window_params = [{transform_indices = @transform_0, window_bounds = array<i64: 8, 256>}, {transform_indices = @transform_1, window_bounds = array<i64: 8, 256>}, {transform_indices = @transform_2, window_bounds = array<i64: 8, 1>}]} {
    %cst = arith.constant 0.000000e+00 : f32
    %0 = vector.broadcast %cst : f32 to vector<8x128xf32>
    %c0 = arith.constant 0 : index
    %c0_0 = arith.constant 0 : index
    %1 = vector.load %arg1[%c0, %c0_0] : memref<8x256xf32, #tpu.memory_space<vmem>>, vector<8x128xf32>
    %c0_1 = arith.constant 0 : index
    %c0_2 = arith.constant 0 : index
    %2 = vector.load %arg2[%c0_1, %c0_2] : memref<8x256xf32, #tpu.memory_space<vmem>>, vector<8x128xf32>
    %3 = arith.addf %0, %2 : vector<8x128xf32>
    %4 = arith.addf %0, %1 : vector<8x128xf32>
    %5 = arith.mulf %1, %2 : vector<8x128xf32>
    %6 = arith.addf %0, %5 : vector<8x128xf32>
    %c0_3 = arith.constant 0 : index
    %c128 = arith.constant 128 : index
    %7 = vector.load %arg1[%c0_3, %c128] : memref<8x256xf32, #tpu.memory_space<vmem>>, vector<8x128xf32>
    %c0_4 = arith.constant 0 : index
    %c128_5 = arith.constant 128 : index
    %8 = vector.load %arg2[%c0_4, %c128_5] : memref<8x256xf32, #tpu.memory_space<vmem>>, vector<8x128xf32>
    %9 = arith.addf %3, %8 : vector<8x128xf32>
    %10 = arith.addf %4, %7 : vector<8x128xf32>
    %11 = arith.mulf %7, %8 : vector<8x128xf32>
    %12 = arith.addf %6, %11 : vector<8x128xf32>
    %cst_6 = arith.constant dense<0.000000e+00> : vector<8xf32>
    %13 = vector.multi_reduction <add>, %9, %cst_6 [1] : vector<8x128xf32> to vector<8xf32>
    %14 = vector.shape_cast %13 : vector<8xf32> to vector<8x1xf32>
    %cst_7 = arith.constant dense<0.000000e+00> : vector<8xf32>
    %15 = vector.multi_reduction <add>, %10, %cst_7 [1] : vector<8x128xf32> to vector<8xf32>
    %16 = vector.shape_cast %15 : vector<8xf32> to vector<8x1xf32>
    %cst_8 = arith.constant dense<0.000000e+00> : vector<8xf32>
    %17 = vector.multi_reduction <add>, %12, %cst_8 [1] : vector<8x128xf32> to vector<8xf32>
    %18 = vector.shape_cast %17 : vector<8xf32> to vector<8x1xf32>
    %cst_9 = arith.constant 2.560000e+02 : f32
    %19 = vector.broadcast %cst_9 : f32 to vector<8x1xf32>
    %20 = arith.subf %19, %14 : vector<8x1xf32>
    %21 = arith.subf %16, %18 : vector<8x1xf32>
    %22 = arith.subf %14, %18 : vector<8x1xf32>
    %23 = arith.divf %21, %20 : vector<8x1xf32>
    %24 = arith.divf %22, %14 : vector<8x1xf32>
    %25 = arith.addf %23, %24 : vector<8x1xf32>
    %c0_10 = arith.constant 0 : index
    %c0_11 = arith.constant 0 : index
    %26 = vector.load %arg3[%c0_10, %c0_11] : memref<8x1xf32, #tpu.memory_space<vmem>>, vector<8x1xf32>
    tpu.vector_store %arg3[%c0_10, %c0_11], %25 {strides = array<i32>} : memref<8x1xf32, #tpu.memory_space<vmem>>, vector<8x1xf32>,
    return
  }
  func.func @transform_0(%arg0: i32) -> (i32, i32) {
    %c0_i32 = arith.constant 0 : i32
    %c0_i32_0 = arith.constant 0 : i32
    return %arg0, %c0_i32 : i32, i32
  }
  func.func @transform_1(%arg0: i32) -> (i32, i32) {
    %c0_i32 = arith.constant 0 : i32
    %c0_i32_0 = arith.constant 0 : i32
    return %arg0, %c0_i32 : i32, i32
  }
  func.func @transform_2(%arg0: i32) -> (i32, i32) {
    %c0_i32 = arith.constant 0 : i32
    %c0_i32_0 = arith.constant 0 : i32
    return %arg0, %c0_i32 : i32, i32
  }
}

</mosaic_0001>

<llo_original>
// kernel: tpu_custom_call.1
$region0: #{tpu_custom_call.1}
  #allocation0 [shape = 'u32[]', space=smem, size = 0x4, offset = 0x4, fixed_abs, tag = 'smem constant byte address 0x4 - core index']
  #allocation1 [shape = 'u32[144,128]{1,0:T(1,128)}', space=vmem, size = 0x12000, scoped, tag = 'internal scratch']
  %s0 = inlined_call_operand.hbm [shape: f32[8,256], index: 0, kind: input, shape index: {}]
  %s1 = inlined_call_operand.hbm [shape: f32[8,256], index: 1, kind: input, shape index: {}]
  %s2 = inlined_call_operand.vmem [shape: f32[8,1], index: 2, kind: output, shape index: {}]
  %s3 = sld [smem:[#allocation0]]
  $region26: #{tpu_custom_call.1} parent=0
    _
  %s5 = ssub.s32 1, %s3
  %s6 = scalar_select 0, %s5, %s3
  $region1: #{tpu_custom_call.1} parent=0
    #allocation2 [shape = 'u8[8192]{0}', space=vmem, size = 0x2000, scoped, tag = 'input window, operand 0, single buffered']
    #allocation3 [shape = 's32[1]{0}', space=sflag, size = 0x4, scoped, tag = 'scoped memory for tpu_custom_call.1']
    #allocation4 [shape = 'u8[8192]{0}', space=vmem, size = 0x2000, scoped, tag = 'input window, operand 1, single buffered']
    #allocation5 [shape = 's32[1]{0}', space=sflag, size = 0x4, scoped, tag = 'scoped memory for tpu_custom_call.1']
    %7 = vsyncpa [#allocation3], 0
    %8 = vsyncpa [#allocation5], 0
    // Predicated region
    $region2: #{tpu_custom_call.1} parent=1 // pred_check
      _
    $region3: #{tpu_custom_call.1} parent=1 // pred_check_branch
      %10 = sbr.rel (0) target = $region5
    $region4: #{tpu_custom_call.1} parent=1 // pred_region
      %s12 = ssub.s32 256, 256
      %13 = vsyncadd [#allocation3], %s12
      %s15 = sshll.u32 [#allocation2], 4
      %s16 = int_to_ptr.vmem [resolvable:$true] %s15
      %18 = dma.hbm_to_vmem [thread:$0]  %s0, 256, %s16, [#allocation3]
    $region5: #{tpu_custom_call.1} parent=1 // pred_fallthru
      _
    // Predicated region
    $region6: #{tpu_custom_call.1} parent=1 // pred_check
      _
    $region7: #{tpu_custom_call.1} parent=1 // pred_check_branch
      %20 = sbr.rel (0) target = $region9
    $region8: #{tpu_custom_call.1} parent=1 // pred_region
      %s22 = ssub.s32 256, 256
      %23 = vsyncadd [#allocation5], %s22
      %s25 = sshll.u32 [#allocation4], 4
      %s26 = int_to_ptr.vmem [resolvable:$true] %s25
      %28 = dma.hbm_to_vmem [thread:$0]  %s1, 256, %s26, [#allocation5]
    $region9: #{tpu_custom_call.1} parent=1 // pred_fallthru
      _
    // Predicated region
    $region10: #{tpu_custom_call.1} parent=1 // pred_check
      _
    $region11: #{tpu_custom_call.1} parent=1 // pred_check_branch
      %30 = sbr.rel (0) target = $region13
    $region12: #{tpu_custom_call.1} parent=1 // pred_region
      %31 = dma.done [#allocation3], 256
    $region13: #{tpu_custom_call.1} parent=1 // pred_fallthru
      _
    // Predicated region
    $region14: #{tpu_custom_call.1} parent=1 // pred_check
      _
    $region15: #{tpu_custom_call.1} parent=1 // pred_check_branch
      %33 = sbr.rel (0) target = $region17
    $region16: #{tpu_custom_call.1} parent=1 // pred_region
      %34 = dma.done [#allocation5], 256
    $region17: #{tpu_custom_call.1} parent=1 // pred_fallthru
      _
    %v35 = vld [vmem:[#allocation2] sm:$0xff]
    %v36 = vld [vmem:[#allocation4] sm:$0xff]
    %v37 = vadd.f32 %v36, 0.0
    %v38 = vadd.f32 %v35, 0.0
    %v39 = vmul.f32 %v35, %v36
    %v40 = vadd.f32 %v39, 0.0
    %v41 = vld [vmem:[#allocation2 + $0x8] sm:$0xff]
    %v42 = vld [vmem:[#allocation4 + $0x8] sm:$0xff]
    %v43 = vadd.f32 %v37, %v42
    %v44 = vadd.f32 %v38, %v41
    %v45 = vmul.f32 %v41, %v42
    %v46 = vadd.f32 %v40, %v45
    %47 = vadd.xlane.f32.xlu0 %v43
    %v48 = vpop.xlane.xlu0 %47
    %49 = vadd.xlane.f32.xlu0 %v44
    %v50 = vpop.xlane.xlu0 %49
    %51 = vadd.xlane.f32.xlu0 %v46
    %v52 = vpop.xlane.xlu0 %51
    %v53 = vsub.f32 256.0, %v48
    %v54 = vsub.f32 %v50, %v52
    %v55 = vsub.f32 %v48, %v52
    %v56 = vrcp.pop %v53
    %v57 = vmul.f32 %v54, %v56
    %v58 = vrcp.pop %v48
    %v59 = vmul.f32 %v55, %v58
    %v60 = vadd.f32 %v57, %v59
    %vm61 = vcmask 7168
    %62 = vst.msk [vmem:[%s2] sm:$0xff] %vm61, %v60
    // Predicated region
    $region18: #{tpu_custom_call.1} parent=1 // pred_check
      _
    $region19: #{tpu_custom_call.1} parent=1 // pred_check_branch
      %64 = sbr.rel (0) target = $region21
    $region20: #{tpu_custom_call.1} parent=1 // pred_region
      _
    $region21: #{tpu_custom_call.1} parent=1 // pred_fallthru
      _
    // Predicated region
    $region22: #{tpu_custom_call.1} parent=1 // pred_check
      _
    $region23: #{tpu_custom_call.1} parent=1 // pred_check_branch
      %66 = sbr.rel (0) target = $region25
    $region24: #{tpu_custom_call.1} parent=1 // pred_region
      _
    $region25: #{tpu_custom_call.1} parent=1 // pred_fallthru
      _
    %67 = vsyncpa [#allocation3], 1
    %68 = vsyncpa [#allocation5], 1

</llo_original>
